<compile_context>
chip_gen: v6e
topology: v6e:2x2x1
jax: 0.10.0
libtpu: 0.0.40
codegen_flags: <defaults>
</compile_context>

<pallas_src>
import functools

import jax
import jax.numpy as jnp
from jax import lax
from jax.experimental import pallas as pl
from jax.experimental.pallas import tpu as pltpu


# ----------------------------------------------------------------------------
# Linear kernel: weight-resident x @ W (+ optional bias), grid over M tiles.
# ----------------------------------------------------------------------------
def _linear_kernel(x_ref, w_ref, o_ref):
    # x_ref: (tm, Cin)  w_ref: (Cin, Cout) resident  o_ref: (tm, Cout)
    o_ref[...] = jnp.dot(
        x_ref[...], w_ref[...], preferred_element_type=jnp.float32
    ).astype(o_ref.dtype)


def _linear_bias_kernel(x_ref, w_ref, b_ref, o_ref):
    acc = jnp.dot(x_ref[...], w_ref[...], preferred_element_type=jnp.float32)
    o_ref[...] = (acc + b_ref[...].astype(jnp.float32)).astype(o_ref.dtype)


def pallas_linear(x, w, b=None, *, tm=256):
    """x: (B, N, Cin) @ w: (Cin, Cout) [+ b] -> (B, N, Cout).

    The full weight stays resident in VMEM (read from HBM once); only the
    flattened M = B*N dimension is tiled/pipelined. The M remainder is handled
    with pl.cdiv + Pallas partial-block masking (no jnp.pad / slicing passes).
    """
    B, N, Cin = x.shape
    Cout = w.shape[1]
    M = B * N
    x2 = x.reshape(M, Cin)

    tm_ = M if M <= tm else tm               # full dim or 8-aligned tile
    grid = (pl.cdiv(M, tm_),)
    itemsize = jnp.dtype(x.dtype).itemsize

    in_specs = [
        pl.BlockSpec((tm_, Cin), lambda i: (i, 0)),
        pl.BlockSpec((Cin, Cout), lambda i: (0, 0)),   # weight resident in VMEM
    ]
    args = [x2, w]
    kernel = _linear_kernel
    bias_bytes = 0
    if b is not None:
        in_specs.append(pl.BlockSpec((1, Cout), lambda i: (0, 0)))
        args.append(b.reshape(1, Cout))
        kernel = _linear_bias_kernel
        bias_bytes = Cout * itemsize

    out = pl.pallas_call(
        kernel,
        out_shape=jax.ShapeDtypeStruct((M, Cout), x.dtype),
        grid_spec=pltpu.PrefetchScalarGridSpec(
            num_scalar_prefetch=0,
            grid=grid,
            in_specs=in_specs,
            out_specs=pl.BlockSpec((tm_, Cout), lambda i: (i, 0)),
        ),
        compiler_params=pltpu.CompilerParams(
            dimension_semantics=("parallel",),
        ),
        cost_estimate=pl.CostEstimate(
            flops=2 * M * Cin * Cout,
            transcendentals=0,
            bytes_accessed=(M * Cin + Cin * Cout + M * Cout) * itemsize
            + bias_bytes,
        ),
    )(*args)
    return out.reshape(B, N, Cout)


# ----------------------------------------------------------------------------
# Fused attention + output projection kernel
# ----------------------------------------------------------------------------
def _attn_proj_kernel(qkv_ref, wp_ref, bp_ref, o_ref, acc_ref, *,
                      num_heads, head_dim):
    # qkv_ref: (N, 3C) one batch, columns = [q heads | k heads | v heads]
    #          (softmax scale already folded into the q columns of W_qkv).
    # wp_ref : (C, C) output-projection weight, VMEM resident across the grid.
    # bp_ref : (1, C) output-projection bias.
    # o_ref  : (N, C) final output for this batch (lane-dense store).
    # acc_ref: (N, C) f32 scratch accumulating the fused head -> proj results.
    #
    # TODO(synk): flash-style KV/q tiling (online softmax, running m/l/acc) and
    # a (B, q_tile) parallel grid for long sequences / v7x (64 MiB VMEM, 2 TCs).
    # TODO(synk): process heads in 128-lane-aligned groups (e.g. 2 heads at
    # Dh=64) to avoid the sub-128-lane q/k/v slices of this unrolled head loop.
    C = num_heads * head_dim
    acc_ref[...] = jnp.zeros_like(acc_ref)
    for h in range(num_heads):
        lo = h * head_dim
        hi = lo + head_dim
        q = qkv_ref[:, lo:hi]
        k = qkv_ref[:, C + lo:C + hi]
        v = qkv_ref[:, 2 * C + lo:2 * C + hi]

        # (N, Dh) x (N, Dh) contracted on Dh -> (N, N); no in-kernel transpose.
        s = lax.dot_general(
            q, k, (((1,), (1,)), ((), ())), preferred_element_type=jnp.float32
        )
        s = s - jnp.max(s, axis=-1, keepdims=True)
        p = jnp.exp(s)
        # Exact reciprocal: exp dominates the EUP budget; approx=True would
        # cost ~1e-3 accuracy on the softmax normalization.
        p = p * pl.reciprocal(jnp.sum(p, axis=-1, keepdims=True), approx=False)

        o_h = jnp.dot(p.astype(v.dtype), v, preferred_element_type=jnp.float32)
        # Fused output projection: head h's output multiplies rows [lo:hi) of
        # W_proj; accumulating here removes the separate (B, N, C) HBM round
        # trip and keeps the final store lane-dense over the full C lanes.
        acc_ref[...] += jnp.dot(
            o_h.astype(wp_ref.dtype), wp_ref[lo:hi, :],
            preferred_element_type=jnp.float32,
        )
    o_ref[...] = (acc_ref[...] + bp_ref[...].astype(jnp.float32)).astype(
        o_ref.dtype
    )


def pallas_attn_proj(qkv, w_proj, b_proj, *, num_heads, head_dim):
    """qkv: (B, N, 3C) packed projections -> proj(attention(qkv)) : (B, N, C)."""
    B, N, C3 = qkv.shape
    C = C3 // 3
    itemsize = jnp.dtype(qkv.dtype).itemsize
    kern = functools.partial(
        _attn_proj_kernel, num_heads=num_heads, head_dim=head_dim
    )
    return pl.pallas_call(
        kern,
        out_shape=jax.ShapeDtypeStruct((B, N, C), qkv.dtype),
        grid_spec=pltpu.PrefetchScalarGridSpec(
            num_scalar_prefetch=0,
            grid=(B,),
            in_specs=[
                pl.BlockSpec((None, N, C3), lambda b: (b, 0, 0)),
                pl.BlockSpec((C, C), lambda b: (0, 0)),      # W_proj resident
                pl.BlockSpec((1, C), lambda b: (0, 0)),
            ],
            out_specs=pl.BlockSpec((None, N, C), lambda b: (b, 0, 0)),
            scratch_shapes=[pltpu.VMEM((N, C), jnp.float32)],
        ),
        compiler_params=pltpu.CompilerParams(
            dimension_semantics=("parallel",),
        ),
        cost_estimate=pl.CostEstimate(
            flops=4 * B * num_heads * N * N * head_dim + 2 * B * N * C * C,
            transcendentals=B * num_heads * N * N,
            bytes_accessed=(B * N * C3 + C * C + C + B * N * C) * itemsize,
        ),
    )(qkv, w_proj, b_proj.reshape(1, C))


# ----------------------------------------------------------------------------
# Module-equivalent forward
# ----------------------------------------------------------------------------
def multi_head_attention(x, params, num_heads):
    """Equivalent of MultiHeadAttention.forward (eval mode, dropout p=0).

    `params` must be the prepared params (softmax scale folded into the q
    columns of w_qkv, see prepare_params); qkv_bias=False -> b_qkv is None.
    """
    B, N, C = x.shape
    Dh = C // num_heads

    # qkv projection: (B, N, C) -> (B, N, 3C); heads are consumed directly
    # from this layout by the fused attention+proj kernel.
    qkv = pallas_linear(x, params["w_qkv"], params.get("b_qkv"))

    # scaled dot-product attention fused with the output projection.
    return pallas_attn_proj(
        qkv, params["w_proj"], params["b_proj"], num_heads=num_heads, head_dim=Dh
    )


# ----------------------------------------------------------------------------
# Parameter init / prep + reference check
# ----------------------------------------------------------------------------
def init_params(key, dim, dtype=jnp.float32):
    k1, k2, k3 = jax.random.split(key, 3)
    bound = 1.0 / (dim ** 0.5)
    # Stored already transposed: (in_dim, out_dim) so the kernel does x @ W.
    w_qkv = jax.random.uniform(k1, (dim, 3 * dim), dtype, -bound, bound)
    w_proj = jax.random.uniform(k2, (dim, dim), dtype, -bound, bound)
    b_proj = jax.random.uniform(k3, (dim,), dtype, -bound, bound)
    # qkv_bias=False (module default) -> no qkv bias at all.
    return {"w_qkv": w_qkv, "b_qkv": None, "w_proj": w_proj, "b_proj": b_proj}


def prepare_params(params, num_heads):
    """One-time, free prep: fold the softmax scale into the q columns of W_qkv
    (and its bias if present) so the kernel never multiplies by scale."""
    w_qkv = params["w_qkv"]
    C = w_qkv.shape[0]
    scale = (C // num_heads) ** -0.5
    out = dict(params)
    out["w_qkv"] = w_qkv.at[:, :C].multiply(scale)
    if params.get("b_qkv") is not None:
        out["b_qkv"] = params["b_qkv"].at[:C].multiply(scale)
    return out


def reference_forward(x, params, num_heads):
    B, N, C = x.shape
    Dh = C // num_heads
    scale = Dh ** -0.5
    qkv = x @ params["w_qkv"]
    if params.get("b_qkv") is not None:
        qkv = qkv + params["b_qkv"]
    qkv = qkv.reshape(B, N, 3, num_heads, Dh).transpose(2, 0, 3, 1, 4)
    q, k, v = qkv[0], qkv[1], qkv[2]
    attn = jnp.einsum("bhqd,bhkd->bhqk", q, k) * scale
    attn = jax.nn.softmax(attn, axis=-1)
    out = jnp.einsum("bhqk,bhkd->bhqd", attn, v)
    out = out.transpose(0, 2, 1, 3).reshape(B, N, C)
    return out @ params["w_proj"] + params["b_proj"]


if __name__ == "__main__":
    B, N, C = 2, 16, 32
    num_heads = 8  # head_dim = 4

    key = jax.random.PRNGKey(0)
    kx, kp = jax.random.split(key)
    x = jax.random.normal(kx, (B, N, C), jnp.float32)
    params = init_params(kp, C)
    prepared = prepare_params(params, num_heads)

    out = multi_head_attention(x, prepared, num_heads)
    out = jax.block_until_ready(out)

    ref = reference_forward(x, params, num_heads)
    assert out.shape == (B, N, C)
    # Tolerance covers f32 MXU matmuls vs XLA default-precision reference.
    assert jnp.allclose(out, ref, atol=2e-3, rtol=2e-3), "mismatch vs reference"

    print("KERNEL_OK")
</pallas_src>

<mosaic_0001>
module attributes {stable_mosaic.version = 11 : i64} {
  func.func @_linear_kernel(%arg0: i32, %arg1: memref<32x32xf32, #tpu.memory_space<vmem>>, %arg2: memref<32x96xf32, #tpu.memory_space<vmem>>, %arg3: memref<32x96xf32, #tpu.memory_space<vmem>>) attributes {dimension_semantics = [#tpu.dimension_semantics<parallel>], iteration_bounds = array<i64: 1>, scalar_prefetch = 0 : i64, scratch_operands = 0 : i64, tpu.core_type = #tpu.core_type<tc>, window_params = [{transform_indices = @transform_0, window_bounds = array<i64: 32, 32>}, {pipeline_mode = #tpu.pipeline_mode<synchronous>, transform_indices = @transform_1, window_bounds = array<i64: 32, 96>}, {transform_indices = @transform_2, window_bounds = array<i64: 32, 96>}]} {
    %c0 = arith.constant 0 : index
    %c0_0 = arith.constant 0 : index
    %0 = vector.load %arg1[%c0, %c0_0] : memref<32x32xf32, #tpu.memory_space<vmem>>, vector<32x32xf32>
    %c0_1 = arith.constant 0 : index
    %c0_2 = arith.constant 0 : index
    %1 = vector.load %arg2[%c0_1, %c0_2] : memref<32x96xf32, #tpu.memory_space<vmem>>, vector<32x96xf32>
    %cst = arith.constant dense<0.000000e+00> : vector<32x96xf32>
    %2 = tpu.matmul %0, %1, %cst {dimension_numbers = #tpu.dot_dimension_numbers<[1], [0], [0], [1], [0, 0, 1, 1], [], []>} : vector<32x32xf32>, vector<32x96xf32>, vector<32x96xf32> -> vector<32x96xf32>
    %c0_3 = arith.constant 0 : index
    %c0_4 = arith.constant 0 : index
    %3 = vector.load %arg3[%c0_3, %c0_4] : memref<32x96xf32, #tpu.memory_space<vmem>>, vector<32x96xf32>
    tpu.vector_store %arg3[%c0_3, %c0_4], %2 {strides = array<i32>} : memref<32x96xf32, #tpu.memory_space<vmem>>, vector<32x96xf32>,
    return
  }
  func.func @transform_0(%arg0: i32) -> (i32, i32) {
    %c0_i32 = arith.constant 0 : i32
    %c0_i32_0 = arith.constant 0 : i32
    return %arg0, %c0_i32 : i32, i32
  }
  func.func @transform_1(%arg0: i32) -> (i32, i32) {
    %c0_i32 = arith.constant 0 : i32
    %c0_i32_0 = arith.constant 0 : i32
    %c0_i32_1 = arith.constant 0 : i32
    return %c0_i32, %c0_i32_0 : i32, i32
  }
  func.func @transform_2(%arg0: i32) -> (i32, i32) {
    %c0_i32 = arith.constant 0 : i32
    %c0_i32_0 = arith.constant 0 : i32
    return %arg0, %c0_i32 : i32, i32
  }
}

</mosaic_0001>

<llo_original>
// kernel: tpu_custom_call.1
$region0: #{tpu_custom_call.1}
  #allocation0 [shape = 'u32[]', space=smem, size = 0x4, offset = 0x4, fixed_abs, tag = 'smem constant byte address 0x4 - core index']
  #allocation1 [shape = 'u32[144,128]{1,0:T(1,128)}', space=vmem, size = 0x12000, scoped, tag = 'internal scratch']
  %s0 = inlined_call_operand.hbm [shape: f32[32,32], index: 0, kind: input, shape index: {}]
  %s1 = inlined_call_operand.hbm [shape: f32[32,96], index: 1, kind: input, shape index: {}]
  %s2 = inlined_call_operand.hbm [shape: f32[32,96], index: 2, kind: output, shape index: {}]
  %s3 = sld [smem:[#allocation0]]
  $region26: #{tpu_custom_call.1} parent=0
    _
  %s5 = ssub.s32 1, %s3
  %s6 = scalar_select 0, %s5, %s3
  $region1: #{tpu_custom_call.1} parent=0
    #allocation2 [shape = 'u8[16384]{0}', space=vmem, size = 0x4000, scoped, tag = 'input window, operand 0, single buffered']
    #allocation3 [shape = 's32[1]{0}', space=sflag, size = 0x4, scoped, tag = 'scoped memory for tpu_custom_call.1']
    #allocation4 [shape = 's32[1]{0}', space=sflag, size = 0x4, scoped, tag = 'scoped memory for tpu_custom_call.1']
    #allocation5 [shape = 'u8[16384]{0}', space=vmem, size = 0x4000, scoped, tag = 'input window, operand 1, single buffered']
    #allocation6 [shape = 's32[1]{0}', space=sflag, size = 0x4, scoped, tag = 'scoped memory for tpu_custom_call.1']
    #allocation7 [shape = 'u8[16384]{0}', space=vmem, size = 0x4000, scoped, tag = 'output window, operand 0, single buffered']
    %7 = vsyncpa [#allocation3], 0
    %8 = vsyncpa [#allocation6], 0
    %9 = vsyncpa [#allocation4], 0
    // Predicated region
    $region2: #{tpu_custom_call.1} parent=1 // pred_check
      _
    $region3: #{tpu_custom_call.1} parent=1 // pred_check_branch
      %11 = sbr.rel (0) target = $region5
    $region4: #{tpu_custom_call.1} parent=1 // pred_region
      %s13 = ssub.s32 512, 512
      %14 = vsyncadd [#allocation3], %s13
      %s15 = sshll.u32 [#allocation2], 4
      %s16 = int_to_ptr.vmem [resolvable:$true] %s15
      %21 = dma.hbm_to_vmem [thread:$0]  %s0, 512, %s16, [#allocation3], 128, 128, 8
    $region5: #{tpu_custom_call.1} parent=1 // pred_fallthru
      _
    // Predicated region
    $region6: #{tpu_custom_call.1} parent=1 // pred_check
      _
    $region7: #{tpu_custom_call.1} parent=1 // pred_check_branch
      %23 = sbr.rel (0) target = $region9
    $region8: #{tpu_custom_call.1} parent=1 // pred_region
      %s25 = ssub.s32 512, 512
      %26 = vsyncadd [#allocation6], %s25
      %s27 = sshll.u32 [#allocation5], 4
      %s28 = int_to_ptr.vmem [resolvable:$true] %s27
      %33 = dma.hbm_to_vmem [thread:$0]  %s1, 512, %s28, [#allocation6], 128, 128, 8
    $region9: #{tpu_custom_call.1} parent=1 // pred_fallthru
      _
    // Predicated region
    $region10: #{tpu_custom_call.1} parent=1 // pred_check
      _
    $region11: #{tpu_custom_call.1} parent=1 // pred_check_branch
      %35 = sbr.rel (0) target = $region13
    $region12: #{tpu_custom_call.1} parent=1 // pred_region
      %36 = dma.done [#allocation3], 512
    $region13: #{tpu_custom_call.1} parent=1 // pred_fallthru
      _
    // Predicated region
    $region14: #{tpu_custom_call.1} parent=1 // pred_check
      _
    $region15: #{tpu_custom_call.1} parent=1 // pred_check_branch
      %38 = sbr.rel (0) target = $region17
    $region16: #{tpu_custom_call.1} parent=1 // pred_region
      %39 = dma.done [#allocation6], 512
    $region17: #{tpu_custom_call.1} parent=1 // pred_fallthru
      _
    %v40 = vld [vmem:[#allocation2] sm:$0xff]
    %v41 = vld [vmem:[#allocation2 + $0x8] sm:$0xff]
    %v42 = vld [vmem:[#allocation2 + $0x10] sm:$0xff]
    %v43 = vld [vmem:[#allocation2 + $0x18] sm:$0xff]
    %v44 = vld [vmem:[#allocation5] sm:$0xff]
    %v45 = vld [vmem:[#allocation5 + $0x8] sm:$0xff]
    %v46 = vld [vmem:[#allocation5 + $0x10] sm:$0xff]
    %v47 = vld [vmem:[#allocation5 + $0x18] sm:$0xff]
    %vm48 = vcmask 261120
    %v50 = vsel %vm48, %v40, 0
    %v53 = vsel %vm48, %v41, 0
    %v56 = vsel %vm48, %v42, 0
    %v59 = vsel %vm48, %v43, 0
    %61 = vmatprep.subr.mxu0 0.0
    %62 = vmatpush1.msra.mxu0 0.0
    %63 = vmatprep.subr.mxu0 0.0
    %64 = vmatpush1.msra.mxu0 0.0
    %65 = vmatprep.subr.mxu0 0.0
    %66 = vmatpush1.msra.mxu0 0.0
    %67 = vmatprep.subr.mxu0 0.0
    %68 = vmatpush1.msra.mxu0 0.0
    %69 = vmatprep.subr.mxu0 0.0
    %70 = vmatpush1.msra.mxu0 0.0
    %71 = vmatprep.subr.mxu0 0.0
    %72 = vmatpush1.msra.mxu0 0.0
    %73 = vmatprep.subr.mxu0 0.0
    %74 = vmatpush1.msra.mxu0 0.0
    %75 = vmatprep.subr.mxu0 0.0
    %76 = vmatpush1.msra.mxu0 0.0
    %77 = vmatprep.subr.mxu0 0.0
    %78 = vmatpush1.msra.mxu0 0.0
    %79 = vmatprep.subr.mxu0 0.0
    %80 = vmatpush1.msra.mxu0 0.0
    %81 = vmatprep.subr.mxu0 0.0
    %82 = vmatpush1.msra.mxu0 0.0
    %83 = vmatprep.subr.mxu0 0.0
    %84 = vmatpush1.msra.mxu0 0.0
    %85 = vmatprep.subr.mxu0 0.0
    %86 = vmatpush1.msra.mxu0 %v47
    %87 = vmatprep.subr.mxu0 0.0
    %88 = vmatpush1.msra.mxu0 %v46
    %89 = vmatprep.subr.mxu0 0.0
    %90 = vmatpush1.msra.mxu0 %v45
    %91 = vmatprep.subr.mxu0 0.0
    %92 = vmatpush1.msra.mxu0 %v44
    %93 = vmatprep.subr.mxu0 0.0
    %94 = vmatpush2.msra.mxu0 0.0
    %95 = vmatprep.subr.mxu0 0.0
    %96 = vmatpush2.msra.mxu0 0.0
    %97 = vmatprep.subr.mxu0 0.0
    %98 = vmatpush2.msra.mxu0 0.0
    %99 = vmatprep.subr.mxu0 0.0
    %100 = vmatpush2.msra.mxu0 0.0
    %101 = vmatprep.subr.mxu0 0.0
    %102 = vmatpush2.msra.mxu0 0.0
    %103 = vmatprep.subr.mxu0 0.0
    %104 = vmatpush2.msra.mxu0 0.0
    %105 = vmatprep.subr.mxu0 0.0
    %106 = vmatpush2.msra.mxu0 0.0
    %107 = vmatprep.subr.mxu0 0.0
    %108 = vmatpush2.msra.mxu0 0.0
    %109 = vmatprep.subr.mxu0 0.0
    %110 = vmatpush2.msra.mxu0 0.0
    %111 = vmatprep.subr.mxu0 0.0
    %112 = vmatpush2.msra.mxu0 0.0
    %113 = vmatprep.subr.mxu0 0.0
    %114 = vmatpush2.msra.mxu0 0.0
    %115 = vmatprep.subr.mxu0 0.0
    %116 = vmatpush2.msra.mxu0 0.0
    %117 = vmatprep.subr.mxu0 0.0
    %118 = vmatpush2.msra.mxu0 0.0
    %119 = vmatprep.subr.mxu0 0.0
    %120 = vmatpush2.msra.mxu0 0.0
    %121 = vmatprep.subr.mxu0 0.0
    %122 = vmatpush2.msra.mxu0 0.0
    %123 = vmatprep.subr.mxu0 0.0
    %124 = vmatpush2.msra.mxu0 0.0
    %125 = vmatprep.mubr.f32.mxu0 0.0
    %126 = vmatmul.mubr.f32.gmra.mxu0 %v50
    %v127 = vpop.f32.mrf.mxu0
    %v128 = vadd.f32 0.0, %v127
    %v129 = vpop.f32.mrf.mxu0
    %130 = vmatprep.mubr.f32.mxu0 0.0
    %131 = vmatmul.mubr.f32.gmra.mxu0 %v53
    %v132 = vpop.f32.mrf.mxu0
    %v133 = vadd.f32 0.0, %v132
    %v134 = vpop.f32.mrf.mxu0
    %135 = vmatprep.mubr.f32.mxu0 0.0
    %136 = vmatmul.mubr.f32.gmra.mxu0 %v56
    %v137 = vpop.f32.mrf.mxu0
    %v138 = vadd.f32 0.0, %v137
    %v139 = vpop.f32.mrf.mxu0
    %140 = vmatprep.mubr.f32.mxu0 0.0
    %141 = vmatmul.mubr.f32.gmra.mxu0 %v59
    %v142 = vpop.f32.mrf.mxu0
    %v143 = vadd.f32 0.0, %v142
    %v144 = vpop.f32.mrf.mxu0
    %145 = vdwg.mxu0
    %vm146 = vcmask 785408
    %147 = vst.msk [vmem:[#allocation7] sm:$0xff] %vm146, %v128
    %148 = vst.msk [vmem:[#allocation7 + $0x8] sm:$0xff] %vm146, %v133
    %149 = vst.msk [vmem:[#allocation7 + $0x10] sm:$0xff] %vm146, %v138
    %150 = vst.msk [vmem:[#allocation7 + $0x18] sm:$0xff] %vm146, %v143
    // Predicated region
    $region18: #{tpu_custom_call.1} parent=1 // pred_check
      _
    $region19: #{tpu_custom_call.1} parent=1 // pred_check_branch
      %152 = sbr.rel (0) target = $region21
    $region20: #{tpu_custom_call.1} parent=1 // pred_region
      %s154 = ssub.s32 512, 512
      %155 = vsyncadd [#allocation4], %s154
      %s156 = sshll.u32 [#allocation7], 4
      %s157 = int_to_ptr.vmem [resolvable:$true] %s156
      %162 = dma.vmem_to_hbm [thread:$0]  %s157, 512, %s2, [#allocation4], 128, 128, 8
    $region21: #{tpu_custom_call.1} parent=1 // pred_fallthru
      _
    // Predicated region
    $region22: #{tpu_custom_call.1} parent=1 // pred_check
      _
    $region23: #{tpu_custom_call.1} parent=1 // pred_check_branch
      %164 = sbr.rel (0) target = $region25
    $region24: #{tpu_custom_call.1} parent=1 // pred_region
      %165 = dma.done [#allocation4], 512
    $region25: #{tpu_custom_call.1} parent=1 // pred_fallthru
      _
    %166 = vsyncpa [#allocation3], 1
    %167 = vsyncpa [#allocation6], 1
    %168 = vsyncpa [#allocation4], 1

</llo_original>
